<compile_context>
chip_gen: v7x
topology: tpu7x:2x2x1
jax: 0.10.0
libtpu: 0.0.40
codegen_flags: <defaults>
</compile_context>

<pallas_src>
import jax
import jax.numpy as jnp
from jax.experimental import pallas as pl
from jax.experimental.pallas import tpu as pltpu

_OUT_PAD = 8                     # padded classifier width (block last dim == full dim)
_STEP_OVERHEAD_S = 0.35e-6       # measured per-grid-step overhead
_HBM_BW = 1.0e12                 # conservative cross-generation HBM bandwidth (B/s)
_VMEM_X_BUDGET = 16 * 1024 * 1024  # bytes allowed for the double-buffered x tile


def _head_kernel(x_ref, w1_ref, b1_ref, w2_ref, b2_ref, w3_ref, b3_ref, o_ref):
    """Fused MLP classification head (all f32, f32 MXU accumulation).

    x_ref : (TB, H)   f32 CLS-embedding tile
    w1    : (H, 64)   b1: (1, 64)
    w2    : (64, 32)  b2: (1, 32)
    w3    : (32, 8)   (zero-padded from (32, 2)), b3: (1, 8)
    o_ref : (TB, 8)   f32 (only [:, :2] is meaningful)
    """
    x = x_ref[...]

    # dense1 + LeakyReLU (PyTorch default negative_slope = 0.01)
    h1 = jnp.dot(x, w1_ref[...], preferred_element_type=jnp.float32) + b1_ref[...]
    h1 = jnp.where(h1 >= 0.0, h1, 0.01 * h1)

    # dense2 + ReLU
    h2 = jnp.dot(h1, w2_ref[...], preferred_element_type=jnp.float32) + b2_ref[...]
    h2 = jnp.maximum(h2, 0.0)

    # classifier (8 padded output columns; tiny writeback)
    out = jnp.dot(h2, w3_ref[...], preferred_element_type=jnp.float32) + b3_ref[...]
    o_ref[...] = out.astype(o_ref.dtype)


def _round_up(x, m):
    return ((x + m - 1) // m) * m


def _choose_tile(batch, hidden):
    """Pick tile_b (multiple of 8, VMEM-gated, <= 2048) minimizing a simple cost
    model: per-grid-step overhead + HBM traffic (kernel read/write plus any
    wrapper-side pad copy of x).  A 2x DMA credit for grids with >= 2 steps lets
    v7x's two TensorCores both get work via the "parallel" batch axis."""
    bytes_per_row = 4 * hidden + 4 * _OUT_PAD
    max_tile = max(8, min(2048, (_VMEM_X_BUDGET // (2 * 4 * hidden)) // 8 * 8))
    best = None
    t = 8
    while t <= max_tile:
        padded = _round_up(batch, t)
        steps = padded // t
        dma = padded * bytes_per_row / _HBM_BW
        if steps >= 2:
            dma *= 0.5  # v7x megacore: each TC streams half the batch
        pad_copy = 0.0
        if padded != batch:
            # jnp.pad materializes a copy of x (read B rows, write padded rows)
            pad_copy = (batch + padded) * 4 * hidden / _HBM_BW
        cost = steps * _STEP_OVERHEAD_S + dma + pad_copy
        if best is None or cost < best[1]:
            best = (t, cost, padded)
        t *= 2
    return best[0], best[2]


def prepare_params(params):
    """One-time parameter preparation (hoisted out of the per-call forward):
    f32 cast, biases reshaped to (1, n), classifier zero-padded to _OUT_PAD cols."""
    w1, b1, w2, b2, w3, b3 = (jnp.asarray(p, jnp.float32) for p in params)
    b1 = b1.reshape(1, -1)
    b2 = b2.reshape(1, -1)
    b3 = b3.reshape(1, -1)
    out_cols = w3.shape[1]
    pad = _OUT_PAD - out_cols
    w3p = jnp.pad(w3, ((0, 0), (0, pad)))
    b3p = jnp.pad(b3, ((0, 0), (0, pad)))
    return (w1, b1, w2, b2, w3p, b3p), out_cols


def transformer_head_forward(x, prepared_params, *, out_cols=2, tile_b=None):
    """Fused classification head on CLS embeddings. x: (B, H) f32 -> (B, out_cols) f32."""
    B, H = x.shape
    w1, b1, w2, b2, w3p, b3p = prepared_params

    if tile_b is None:
        tile_b, B_pad = _choose_tile(B, H)
    else:
        assert tile_b % 8 == 0, "tile_b must be a multiple of 8 (sublane granularity)"
        B_pad = _round_up(B, tile_b)

    if B_pad != B:
        # Zero rows; their (bias-driven) outputs are sliced off below.  Never reduce
        # over the padded output before the [:B] slice.
        x = jnp.pad(x, ((0, B_pad - B), (0, 0)))
    grid = (B_pad // tile_b,)

    full = lambda i: (0, 0)  # weights/biases not tiled over the grid (DMA'd once)

    flops = 2 * B_pad * (H * 64 + 64 * 32 + 32 * _OUT_PAD)
    bytes_accessed = (
        B_pad * H * 4                                             # x (f32)
        + (H * 64 + 64 * 32 + 32 * _OUT_PAD + 64 + 32 + _OUT_PAD) * 4  # weights+biases
        + B_pad * _OUT_PAD * 4                                    # output (f32)
    )

    out_padded = pl.pallas_call(
        _head_kernel,
        out_shape=jax.ShapeDtypeStruct((B_pad, _OUT_PAD), jnp.float32),
        grid_spec=pltpu.PrefetchScalarGridSpec(
            num_scalar_prefetch=0,
            grid=grid,
            in_specs=[
                pl.BlockSpec((tile_b, H), lambda i: (i, 0)),   # x tile
                pl.BlockSpec(w1.shape, full),
                pl.BlockSpec(b1.shape, full),
                pl.BlockSpec(w2.shape, full),
                pl.BlockSpec(b2.shape, full),
                pl.BlockSpec(w3p.shape, full),
                pl.BlockSpec(b3p.shape, full),
            ],
            out_specs=pl.BlockSpec((tile_b, _OUT_PAD), lambda i: (i, 0)),
        ),
        compiler_params=pltpu.CompilerParams(
            dimension_semantics=("parallel",),
        ),
        cost_estimate=pl.CostEstimate(
            flops=flops, transcendentals=0, bytes_accessed=bytes_accessed
        ),
    )(x, w1, b1, w2, b2, w3p, b3p)

    return out_padded[:B, :out_cols]


def init_params(key, hidden_size):
    """Deterministic PyTorch-Linear-style init: U(-1/sqrt(fan_in), 1/sqrt(fan_in))."""
    ks = jax.random.split(key, 6)

    def lin(kw, kb, fan_in, fan_out):
        bound = 1.0 / jnp.sqrt(jnp.float32(fan_in))
        w = jax.random.uniform(kw, (fan_in, fan_out), jnp.float32, -bound, bound)
        b = jax.random.uniform(kb, (fan_out,), jnp.float32, -bound, bound)
        return w, b

    w1, b1 = lin(ks[0], ks[1], hidden_size, 64)
    w2, b2 = lin(ks[2], ks[3], 64, 32)
    w3, b3 = lin(ks[4], ks[5], 32, 2)
    return (w1, b1, w2, b2, w3, b3)


def _reference(x, params):
    """Pure f32 reference matching the PyTorch head."""
    w1, b1, w2, b2, w3, b3 = params
    h1 = x @ w1 + b1.reshape(1, -1)
    h1 = jnp.where(h1 >= 0.0, h1, 0.01 * h1)
    h2 = jnp.maximum(h1 @ w2 + b2.reshape(1, -1), 0.0)
    return h2 @ w3 + b3.reshape(1, -1)


if __name__ == "__main__":
    key = jax.random.PRNGKey(0)
    k_x, k_p, k_x2 = jax.random.split(key, 3)

    batch = 16
    hidden = 128  # stands in for the encoder's hidden_size (768/1024 in real configs)

    # Synthetic CLS embeddings standing in for encoder(tokenizer(text))[0][:, 0]
    x = jax.random.normal(k_x, (batch, hidden), dtype=jnp.float32)
    params = init_params(k_p, hidden)
    prepared, n_classes = prepare_params(params)

    fwd = jax.jit(lambda xx, pp: transformer_head_forward(xx, pp, out_cols=2))
    out = jax.block_until_ready(fwd(x, prepared))

    ref = _reference(x, params)
    assert out.shape == (batch, 2)
    assert jnp.allclose(out, ref, atol=1e-2, rtol=1e-2), "mismatch vs reference"

    # Ragged batch exercises the batch-padding path.
    x2 = jax.random.normal(k_x2, (10, hidden), dtype=jnp.float32)
    out2 = jax.block_until_ready(transformer_head_forward(x2, prepared))
    ref2 = _reference(x2, params)
    assert out2.shape == (10, 2)
    assert jnp.allclose(out2, ref2, atol=1e-2, rtol=1e-2), "mismatch vs reference (ragged)"

    print("KERNEL_OK")
</pallas_src>

<mosaic_0001>
module attributes {stable_mosaic.version = 11 : i64} {
  func.func @_head_kernel(%arg0: i32, %arg1: memref<16x128xf32, #tpu.memory_space<vmem>>, %arg2: memref<128x64xf32, #tpu.memory_space<vmem>>, %arg3: memref<1x64xf32, #tpu.memory_space<vmem>>, %arg4: memref<64x32xf32, #tpu.memory_space<vmem>>, %arg5: memref<1x32xf32, #tpu.memory_space<vmem>>, %arg6: memref<32x8xf32, #tpu.memory_space<vmem>>, %arg7: memref<1x8xf32, #tpu.memory_space<vmem>>, %arg8: memref<16x8xf32, #tpu.memory_space<vmem>>) attributes {dimension_semantics = [#tpu.dimension_semantics<parallel>], iteration_bounds = array<i64: 1>, scalar_prefetch = 0 : i64, scratch_operands = 0 : i64, tpu.core_type = #tpu.core_type<tc>, window_params = [{transform_indices = @transform_0, window_bounds = array<i64: 16, 128>}, {pipeline_mode = #tpu.pipeline_mode<synchronous>, transform_indices = @transform_1, window_bounds = array<i64: 128, 64>}, {pipeline_mode = #tpu.pipeline_mode<synchronous>, transform_indices = @transform_2, window_bounds = array<i64: 1, 64>}, {pipeline_mode = #tpu.pipeline_mode<synchronous>, transform_indices = @transform_3, window_bounds = array<i64: 64, 32>}, {pipeline_mode = #tpu.pipeline_mode<synchronous>, transform_indices = @transform_4, window_bounds = array<i64: 1, 32>}, {pipeline_mode = #tpu.pipeline_mode<synchronous>, transform_indices = @transform_5, window_bounds = array<i64: 32, 8>}, {pipeline_mode = #tpu.pipeline_mode<synchronous>, transform_indices = @transform_6, window_bounds = array<i64: 1, 8>}, {transform_indices = @transform_7, window_bounds = array<i64: 16, 8>}]} {
    %c0 = arith.constant 0 : index
    %c0_0 = arith.constant 0 : index
    %0 = vector.load %arg1[%c0, %c0_0] : memref<16x128xf32, #tpu.memory_space<vmem>>, vector<16x128xf32>
    %c0_1 = arith.constant 0 : index
    %c0_2 = arith.constant 0 : index
    %1 = vector.load %arg2[%c0_1, %c0_2] : memref<128x64xf32, #tpu.memory_space<vmem>>, vector<128x64xf32>
    %cst = arith.constant dense<0.000000e+00> : vector<16x64xf32>
    %2 = tpu.matmul %0, %1, %cst {dimension_numbers = #tpu.dot_dimension_numbers<[1], [0], [0], [1], [0, 0, 1, 1], [], []>} : vector<16x128xf32>, vector<128x64xf32>, vector<16x64xf32> -> vector<16x64xf32>
    %c0_3 = arith.constant 0 : index
    %c0_4 = arith.constant 0 : index
    %3 = vector.load %arg3[%c0_3, %c0_4] : memref<1x64xf32, #tpu.memory_space<vmem>>, vector<1x64xf32>
    %4 = vector.broadcast %3 : vector<1x64xf32> to vector<16x64xf32>
    %5 = arith.addf %2, %4 : vector<16x64xf32>
    %cst_5 = arith.constant 0.000000e+00 : f32
    %6 = vector.broadcast %cst_5 : f32 to vector<16x64xf32>
    %7 = arith.cmpf oge, %5, %6 : vector<16x64xf32>
    %cst_6 = arith.constant 0.00999999977 : f32
    %8 = vector.broadcast %cst_6 : f32 to vector<16x64xf32>
    %9 = arith.mulf %8, %5 : vector<16x64xf32>
    %10 = arith.select %7, %5, %9 : vector<16x64xi1>, vector<16x64xf32>
    %c0_7 = arith.constant 0 : index
    %c0_8 = arith.constant 0 : index
    %11 = vector.load %arg4[%c0_7, %c0_8] : memref<64x32xf32, #tpu.memory_space<vmem>>, vector<64x32xf32>
    %cst_9 = arith.constant dense<0.000000e+00> : vector<16x32xf32>
    %12 = tpu.matmul %10, %11, %cst_9 {dimension_numbers = #tpu.dot_dimension_numbers<[1], [0], [0], [1], [0, 0, 1, 1], [], []>} : vector<16x64xf32>, vector<64x32xf32>, vector<16x32xf32> -> vector<16x32xf32>
    %c0_10 = arith.constant 0 : index
    %c0_11 = arith.constant 0 : index
    %13 = vector.load %arg5[%c0_10, %c0_11] : memref<1x32xf32, #tpu.memory_space<vmem>>, vector<1x32xf32>
    %14 = vector.broadcast %13 : vector<1x32xf32> to vector<16x32xf32>
    %15 = arith.addf %12, %14 : vector<16x32xf32>
    %cst_12 = arith.constant 0.000000e+00 : f32
    %16 = vector.broadcast %cst_12 : f32 to vector<16x32xf32>
    %17 = arith.maximumf %15, %16 : vector<16x32xf32>
    %c0_13 = arith.constant 0 : index
    %c0_14 = arith.constant 0 : index
    %18 = vector.load %arg6[%c0_13, %c0_14] : memref<32x8xf32, #tpu.memory_space<vmem>>, vector<32x8xf32>
    %cst_15 = arith.constant dense<0.000000e+00> : vector<16x8xf32>
    %19 = tpu.matmul %17, %18, %cst_15 {dimension_numbers = #tpu.dot_dimension_numbers<[1], [0], [0], [1], [0, 0, 1, 1], [], []>} : vector<16x32xf32>, vector<32x8xf32>, vector<16x8xf32> -> vector<16x8xf32>
    %c0_16 = arith.constant 0 : index
    %c0_17 = arith.constant 0 : index
    %20 = vector.load %arg7[%c0_16, %c0_17] : memref<1x8xf32, #tpu.memory_space<vmem>>, vector<1x8xf32>
    %21 = vector.broadcast %20 : vector<1x8xf32> to vector<16x8xf32>
    %22 = arith.addf %19, %21 : vector<16x8xf32>
    %c0_18 = arith.constant 0 : index
    %c0_19 = arith.constant 0 : index
    %23 = vector.load %arg8[%c0_18, %c0_19] : memref<16x8xf32, #tpu.memory_space<vmem>>, vector<16x8xf32>
    tpu.vector_store %arg8[%c0_18, %c0_19], %22 {strides = array<i32>} : memref<16x8xf32, #tpu.memory_space<vmem>>, vector<16x8xf32>,
    return
  }
  func.func @transform_0(%arg0: i32) -> (i32, i32) {
    %c0_i32 = arith.constant 0 : i32
    %c0_i32_0 = arith.constant 0 : i32
    return %arg0, %c0_i32 : i32, i32
  }
  func.func @transform_1(%arg0: i32) -> (i32, i32) {
    %c0_i32 = arith.constant 0 : i32
    %c0_i32_0 = arith.constant 0 : i32
    %c0_i32_1 = arith.constant 0 : i32
    return %c0_i32, %c0_i32_0 : i32, i32
  }
  func.func @transform_2(%arg0: i32) -> (i32, i32) {
    %c0_i32 = arith.constant 0 : i32
    %c0_i32_0 = arith.constant 0 : i32
    %c0_i32_1 = arith.constant 0 : i32
    return %c0_i32, %c0_i32_0 : i32, i32
  }
  func.func @transform_3(%arg0: i32) -> (i32, i32) {
    %c0_i32 = arith.constant 0 : i32
    %c0_i32_0 = arith.constant 0 : i32
    %c0_i32_1 = arith.constant 0 : i32
    return %c0_i32, %c0_i32_0 : i32, i32
  }
  func.func @transform_4(%arg0: i32) -> (i32, i32) {
    %c0_i32 = arith.constant 0 : i32
    %c0_i32_0 = arith.constant 0 : i32
    %c0_i32_1 = arith.constant 0 : i32
    return %c0_i32, %c0_i32_0 : i32, i32
  }
  func.func @transform_5(%arg0: i32) -> (i32, i32) {
    %c0_i32 = arith.constant 0 : i32
    %c0_i32_0 = arith.constant 0 : i32
    %c0_i32_1 = arith.constant 0 : i32
    return %c0_i32, %c0_i32_0 : i32, i32
  }
  func.func @transform_6(%arg0: i32) -> (i32, i32) {
    %c0_i32 = arith.constant 0 : i32
    %c0_i32_0 = arith.constant 0 : i32
    %c0_i32_1 = arith.constant 0 : i32
    return %c0_i32, %c0_i32_0 : i32, i32
  }
  func.func @transform_7(%arg0: i32) -> (i32, i32) {
    %c0_i32 = arith.constant 0 : i32
    %c0_i32_0 = arith.constant 0 : i32
    return %arg0, %c0_i32 : i32, i32
  }
}

</mosaic_0001>

<llo_original>
// kernel: _lambda_.1
$region0: #{_lambda_.1}
  #allocation0 [shape = 'u32[]', space=smem, size = 0x4, offset = 0x4, fixed_abs, tag = 'smem constant byte address 0x4 - core index']
  #allocation1 [shape = 'u32[144,128]{1,0:T(1,128)}', space=vmem, size = 0x12000, scoped, tag = 'internal scratch']
  %s0 = inlined_call_operand.vmem [shape: f32[16,128], index: 0, kind: input, shape index: {}]
  %s1 = inlined_call_operand.vmem [shape: f32[128,64], index: 1, kind: input, shape index: {}]
  %s2 = inlined_call_operand.vmem [shape: f32[1,64], index: 2, kind: input, shape index: {}]
  %s3 = inlined_call_operand.vmem [shape: f32[64,32], index: 3, kind: input, shape index: {}]
  %s4 = inlined_call_operand.vmem [shape: f32[1,32], index: 4, kind: input, shape index: {}]
  %s5 = inlined_call_operand.vmem [shape: f32[32,8], index: 5, kind: input, shape index: {}]
  %s6 = inlined_call_operand.vmem [shape: f32[1,8], index: 6, kind: input, shape index: {}]
  %s7 = inlined_call_operand.vmem [shape: f32[16,8], index: 7, kind: output, shape index: {}]
  %s8 = sld [smem:[#allocation0]]
  $region38: #{_lambda_.1} parent=0
    _
  %s10 = ssub.s32 1, %s8
  %s11 = scalar_select 0, %s10, %s8
  // Predicated region
  $region2: #{_lambda_.1} parent=0 // pred_check
    _
  $region3: #{_lambda_.1} parent=0 // pred_check_branch
    %13 = sbr.rel (0) target = $region5
  $region4: #{_lambda_.1} parent=0 // pred_region
    _
  $region5: #{_lambda_.1} parent=0 // pred_fallthru
    _
  // Predicated region
  $region6: #{_lambda_.1} parent=0 // pred_check
    _
  $region7: #{_lambda_.1} parent=0 // pred_check_branch
    %15 = sbr.rel (0) target = $region9
  $region8: #{_lambda_.1} parent=0 // pred_region
    _
  $region9: #{_lambda_.1} parent=0 // pred_fallthru
    _
  // Predicated region
  $region10: #{_lambda_.1} parent=0 // pred_check
    _
  $region11: #{_lambda_.1} parent=0 // pred_check_branch
    %17 = sbr.rel (0) target = $region13
  $region12: #{_lambda_.1} parent=0 // pred_region
    _
  $region13: #{_lambda_.1} parent=0 // pred_fallthru
    _
  // Predicated region
  $region14: #{_lambda_.1} parent=0 // pred_check
    _
  $region15: #{_lambda_.1} parent=0 // pred_check_branch
    %19 = sbr.rel (0) target = $region17
  $region16: #{_lambda_.1} parent=0 // pred_region
    _
  $region17: #{_lambda_.1} parent=0 // pred_fallthru
    _
  // Predicated region
  $region18: #{_lambda_.1} parent=0 // pred_check
    _
  $region19: #{_lambda_.1} parent=0 // pred_check_branch
    %21 = sbr.rel (0) target = $region21
  $region20: #{_lambda_.1} parent=0 // pred_region
    _
  $region21: #{_lambda_.1} parent=0 // pred_fallthru
    _
  // Predicated region
  $region22: #{_lambda_.1} parent=0 // pred_check
    _
  $region23: #{_lambda_.1} parent=0 // pred_check_branch
    %23 = sbr.rel (0) target = $region25
  $region24: #{_lambda_.1} parent=0 // pred_region
    _
  $region25: #{_lambda_.1} parent=0 // pred_fallthru
    _
  // Predicated region
  $region26: #{_lambda_.1} parent=0 // pred_check
    _
  $region27: #{_lambda_.1} parent=0 // pred_check_branch
    %25 = sbr.rel (0) target = $region29
  $region28: #{_lambda_.1} parent=0 // pred_region
    _
  $region29: #{_lambda_.1} parent=0 // pred_fallthru
    _
  %v26 = vld [vmem:[%s0] sm:$0xff]
  %v27 = vld [vmem:[%s0 + $0x8] sm:$0xff]
  %v28 = vld [vmem:[%s1] sm:$0xff]
  %v29 = vld [vmem:[%s1 + $0x8] sm:$0xff]
  %v30 = vld [vmem:[%s1 + $0x10] sm:$0xff]
  %v31 = vld [vmem:[%s1 + $0x18] sm:$0xff]
  %v32 = vld [vmem:[%s1 + $0x20] sm:$0xff]
  %v33 = vld [vmem:[%s1 + $0x28] sm:$0xff]
  %v34 = vld [vmem:[%s1 + $0x30] sm:$0xff]
  %v35 = vld [vmem:[%s1 + $0x38] sm:$0xff]
  %v36 = vld [vmem:[%s1 + $0x40] sm:$0xff]
  %v37 = vld [vmem:[%s1 + $0x48] sm:$0xff]
  %v38 = vld [vmem:[%s1 + $0x50] sm:$0xff]
  %v39 = vld [vmem:[%s1 + $0x58] sm:$0xff]
  %v40 = vld [vmem:[%s1 + $0x60] sm:$0xff]
  %v41 = vld [vmem:[%s1 + $0x68] sm:$0xff]
  %v42 = vld [vmem:[%s1 + $0x70] sm:$0xff]
  %v43 = vld [vmem:[%s1 + $0x78] sm:$0xff]
  %v44 = vld [vmem:[%s2] sm:$0x1]
  %v46 = vlaneseq
  %v47 = vshrl.u32 %v46, 7
  %v48 = vsub.s32 0, %v47
  %v49 = vrot.slane %v44, %v48
  %51 = vmatprep.subr.mxu0 0.0
  %52 = vmatpush1.msra.mxu0 %v28
  %53 = vmatprep.subr.mxu0 0.0
  %54 = vmatpush1.msra.mxu0 %v29
  %55 = vmatprep.subr.mxu0 0.0
  %56 = vmatpush1.msra.mxu0 %v30
  %57 = vmatprep.subr.mxu0 0.0
  %58 = vmatpush1.msra.mxu0 %v31
  %59 = vmatprep.subr.mxu0 0.0
  %60 = vmatpush1.msra.mxu0 %v32
  %61 = vmatprep.subr.mxu0 0.0
  %62 = vmatpush1.msra.mxu0 %v33
  %63 = vmatprep.subr.mxu0 0.0
  %64 = vmatpush1.msra.mxu0 %v34
  %65 = vmatprep.subr.mxu0 0.0
  %66 = vmatpush1.msra.mxu0 %v35
  %67 = vmatprep.subr.mxu0 0.0
  %68 = vmatpush1.msra.mxu0 %v36
  %69 = vmatprep.subr.mxu0 0.0
  %70 = vmatpush1.msra.mxu0 %v37
  %71 = vmatprep.subr.mxu0 0.0
  %72 = vmatpush1.msra.mxu0 %v38
  %73 = vmatprep.subr.mxu0 0.0
  %74 = vmatpush1.msra.mxu0 %v39
  %75 = vmatprep.subr.mxu0 0.0
  %76 = vmatpush1.msra.mxu0 %v40
  %77 = vmatprep.subr.mxu0 0.0
  %78 = vmatpush1.msra.mxu0 %v41
  %79 = vmatprep.subr.mxu0 0.0
  %80 = vmatpush1.msra.mxu0 %v42
  %81 = vmatprep.subr.mxu0 0.0
  %82 = vmatpush1.msra.mxu0 %v43
  %83 = vmatprep.subr.mxu0 0.0
  %84 = vmatpush1.msra.mxu0 0.0
  %85 = vmatprep.subr.mxu0 0.0
  %86 = vmatpush1.msra.mxu0 0.0
  %87 = vmatprep.subr.mxu0 0.0
  %88 = vmatpush1.msra.mxu0 0.0
  %89 = vmatprep.subr.mxu0 0.0
  %90 = vmatpush1.msra.mxu0 0.0
  %91 = vmatprep.subr.mxu0 0.0
  %92 = vmatpush1.msra.mxu0 0.0
  %93 = vmatprep.subr.mxu0 0.0
  %94 = vmatpush1.msra.mxu0 0.0
  %95 = vmatprep.subr.mxu0 0.0
  %96 = vmatpush1.msra.mxu0 0.0
  %97 = vmatprep.subr.mxu0 0.0
  %98 = vmatpush1.msra.mxu0 0.0
  %99 = vmatprep.subr.mxu0 0.0
  %100 = vmatpush1.msra.mxu0 0.0
  %101 = vmatprep.subr.mxu0 0.0
  %102 = vmatpush1.msra.mxu0 0.0
  %103 = vmatprep.subr.mxu0 0.0
  %104 = vmatpush1.msra.mxu0 0.0
  %105 = vmatprep.subr.mxu0 0.0
  %106 = vmatpush1.msra.mxu0 0.0
  %107 = vmatprep.subr.mxu0 0.0
  %108 = vmatpush1.msra.mxu0 0.0
  %109 = vmatprep.subr.mxu0 0.0
  %110 = vmatpush1.msra.mxu0 0.0
  %111 = vmatprep.subr.mxu0 0.0
  %112 = vmatpush1.msra.mxu0 0.0
  %113 = vmatprep.subr.mxu0 0.0
  %114 = vmatpush1.msra.mxu0 0.0
  %115 = vmatprep.mubr.f32.mxu0 0.0
  %116 = vmatmul.mubr.f32.gmra.mrb[0].mxu0 %v26
  %v117 = vpop.f32.mrb[0].mxu0
  %v118 = vadd.f32 %v49, %v117
  %v119 = vpop.f32.mrb[0].mxu0
  %120 = vmatprep.mubr.f32.mxu0 0.0
  %121 = vmatmul.mubr.f32.gmra.mrb[0].mxu0 %v27
  %v122 = vpop.f32.mrb[0].mxu0
  %v123 = vadd.f32 %v49, %v122
  %v124 = vpop.f32.mrb[0].mxu0
  %125 = vdwg.mxu0
  %vm126 = vcmp.ge.f32.partialorder %v118, 0.0
  %vm127 = vcmp.ge.f32.partialorder %v123, 0.0
  %v128 = vmul.f32 %v118, 0.01
  %v129 = vmul.f32 %v123, 0.01
  %v130 = vsel %vm126, %v118, %v128
  %v131 = vsel %vm127, %v123, %v129
  %v132 = vld [vmem:[%s3] sm:$0xff]
  %v133 = vld [vmem:[%s3 + $0x8] sm:$0xff]
  %v134 = vld [vmem:[%s3 + $0x10] sm:$0xff]
  %v135 = vld [vmem:[%s3 + $0x18] sm:$0xff]
  %v136 = vld [vmem:[%s3 + $0x20] sm:$0xff]
  %v137 = vld [vmem:[%s3 + $0x28] sm:$0xff]
  %v138 = vld [vmem:[%s3 + $0x30] sm:$0xff]
  %v139 = vld [vmem:[%s3 + $0x38] sm:$0xff]
  %v140 = vld [vmem:[%s4] sm:$0x1]
  %v142 = vlaneseq
  %v143 = vshrl.u32 %v142, 7
  %v144 = vsub.s32 0, %v143
  %v145 = vrot.slane %v140, %v144
  %vm147 = vcmask 523264
  %v149 = vsel %vm147, %v130, 0
  %v152 = vsel %vm147, %v131, 0
  %154 = vmatprep.subr.mxu0 0.0
  %155 = vmatpush1.msra.mxu0 %v132
  %156 = vmatprep.subr.mxu0 0.0
  %157 = vmatpush1.msra.mxu0 %v133
  %158 = vmatprep.subr.mxu0 0.0
  %159 = vmatpush1.msra.mxu0 %v134
  %160 = vmatprep.subr.mxu0 0.0
  %161 = vmatpush1.msra.mxu0 %v135
  %162 = vmatprep.subr.mxu0 0.0
  %163 = vmatpush1.msra.mxu0 %v136
  %164 = vmatprep.subr.mxu0 0.0
  %165 = vmatpush1.msra.mxu0 %v137
  %166 = vmatprep.subr.mxu0 0.0
  %167 = vmatpush1.msra.mxu0 %v138
  %168 = vmatprep.subr.mxu0 0.0
  %169 = vmatpush1.msra.mxu0 %v139
  %170 = vmatprep.subr.mxu0 0.0
  %171 = vmatpush1.msra.mxu0 0.0
  %172 = vmatprep.subr.mxu0 0.0
  %173 = vmatpush1.msra.mxu0 0.0
  %174 = vmatprep.subr.mxu0 0.0
  %175 = vmatpush1.msra.mxu0 0.0
  %176 = vmatprep.subr.mxu0 0.0
  %177 = vmatpush1.msra.mxu0 0.0
  %178 = vmatprep.subr.mxu0 0.0
  %179 = vmatpush1.msra.mxu0 0.0
  %180 = vmatprep.subr.mxu0 0.0
  %181 = vmatpush1.msra.mxu0 0.0
  %182 = vmatprep.subr.mxu0 0.0
  %183 = vmatpush1.msra.mxu0 0.0
  %184 = vmatprep.subr.mxu0 0.0
  %185 = vmatpush1.msra.mxu0 0.0
  %186 = vmatprep.subr.mxu0 0.0
  %187 = vmatpush1.msra.mxu0 0.0
  %188 = vmatprep.subr.mxu0 0.0
  %189 = vmatpush1.msra.mxu0 0.0
  %190 = vmatprep.subr.mxu0 0.0
  %191 = vmatpush1.msra.mxu0 0.0
  %192 = vmatprep.subr.mxu0 0.0
  %193 = vmatpush1.msra.mxu0 0.0
  %194 = vmatprep.subr.mxu0 0.0
  %195 = vmatpush1.msra.mxu0 0.0
  %196 = vmatprep.subr.mxu0 0.0
  %197 = vmatpush1.msra.mxu0 0.0
  %198 = vmatprep.subr.mxu0 0.0
  %199 = vmatpush1.msra.mxu0 0.0
  %200 = vmatprep.subr.mxu0 0.0
  %201 = vmatpush1.msra.mxu0 0.0
  %202 = vmatprep.subr.mxu0 0.0
  %203 = vmatpush1.msra.mxu0 0.0
  %204 = vmatprep.subr.mxu0 0.0
  %205 = vmatpush1.msra.mxu0 0.0
  %206 = vmatprep.subr.mxu0 0.0
  %207 = vmatpush1.msra.mxu0 0.0
  %208 = vmatprep.subr.mxu0 0.0
  %209 = vmatpush1.msra.mxu0 0.0
  %210 = vmatprep.subr.mxu0 0.0
  %211 = vmatpush1.msra.mxu0 0.0
  %212 = vmatprep.subr.mxu0 0.0
  %213 = vmatpush1.msra.mxu0 0.0
  %214 = vmatprep.subr.mxu0 0.0
  %215 = vmatpush1.msra.mxu0 0.0
  %216 = vmatprep.subr.mxu0 0.0
  %217 = vmatpush1.msra.mxu0 0.0
  %218 = vmatprep.mubr.f32.mxu0 0.0
  %219 = vmatmul.mubr.f32.gmra.mrb[0].mxu0 %v149
  %v220 = vpop.f32.mrb[0].mxu0
  %v221 = vadd.f32 %v145, %v220
  %v222 = vpop.f32.mrb[0].mxu0
  %223 = vmatprep.mubr.f32.mxu0 0.0
  %224 = vmatmul.mubr.f32.gmra.mrb[0].mxu0 %v152
  %v225 = vpop.f32.mrb[0].mxu0
  %v226 = vadd.f32 %v145, %v225
  %v227 = vpop.f32.mrb[0].mxu0
  %228 = vdwg.mxu0
  %v229 = vmax.f32 %v221, 0.0
  %v230 = vmax.f32 %v226, 0.0
  %v231 = vld [vmem:[%s5] sm:$0xff]
  %v232 = vld [vmem:[%s5 + $0x8] sm:$0xff]
  %v233 = vld [vmem:[%s5 + $0x10] sm:$0xff]
  %v234 = vld [vmem:[%s5 + $0x18] sm:$0xff]
  %v235 = vld [vmem:[%s6] sm:$0x1]
  %v237 = vlaneseq
  %v238 = vshrl.u32 %v237, 7
  %v239 = vsub.s32 0, %v238
  %v240 = vrot.slane %v235, %v239
  %vm242 = vcmask 261120
  %v244 = vsel %vm242, %v229, 0
  %v247 = vsel %vm242, %v230, 0
  %249 = vmatprep.subr.mxu0 0.0
  %250 = vmatpush1.msra.mxu0 %v231
  %251 = vmatprep.subr.mxu0 0.0
  %252 = vmatpush1.msra.mxu0 %v232
  %253 = vmatprep.subr.mxu0 0.0
  %254 = vmatpush1.msra.mxu0 %v233
  %255 = vmatprep.subr.mxu0 0.0
  %256 = vmatpush1.msra.mxu0 %v234
  %257 = vmatprep.subr.mxu0 0.0
  %258 = vmatpush1.msra.mxu0 0.0
  %259 = vmatprep.subr.mxu0 0.0
  %260 = vmatpush1.msra.mxu0 0.0
  %261 = vmatprep.subr.mxu0 0.0
  %262 = vmatpush1.msra.mxu0 0.0
  %263 = vmatprep.subr.mxu0 0.0
  %264 = vmatpush1.msra.mxu0 0.0
  %265 = vmatprep.subr.mxu0 0.0
  %266 = vmatpush1.msra.mxu0 0.0
  %267 = vmatprep.subr.mxu0 0.0
  %268 = vmatpush1.msra.mxu0 0.0
  %269 = vmatprep.subr.mxu0 0.0
  %270 = vmatpush1.msra.mxu0 0.0
  %271 = vmatprep.subr.mxu0 0.0
  %272 = vmatpush1.msra.mxu0 0.0
  %273 = vmatprep.subr.mxu0 0.0
  %274 = vmatpush1.msra.mxu0 0.0
  %275 = vmatprep.subr.mxu0 0.0
  %276 = vmatpush1.msra.mxu0 0.0
  %277 = vmatprep.subr.mxu0 0.0
  %278 = vmatpush1.msra.mxu0 0.0
  %279 = vmatprep.subr.mxu0 0.0
  %280 = vmatpush1.msra.mxu0 0.0
  %281 = vmatprep.subr.mxu0 0.0
  %282 = vmatpush1.msra.mxu0 0.0
  %283 = vmatprep.subr.mxu0 0.0
  %284 = vmatpush1.msra.mxu0 0.0
  %285 = vmatprep.subr.mxu0 0.0
  %286 = vmatpush1.msra.mxu0 0.0
  %287 = vmatprep.subr.mxu0 0.0
  %288 = vmatpush1.msra.mxu0 0.0
  %289 = vmatprep.subr.mxu0 0.0
  %290 = vmatpush1.msra.mxu0 0.0
  %291 = vmatprep.subr.mxu0 0.0
  %292 = vmatpush1.msra.mxu0 0.0
  %293 = vmatprep.subr.mxu0 0.0
  %294 = vmatpush1.msra.mxu0 0.0
  %295 = vmatprep.subr.mxu0 0.0
  %296 = vmatpush1.msra.mxu0 0.0
  %297 = vmatprep.subr.mxu0 0.0
  %298 = vmatpush1.msra.mxu0 0.0
  %299 = vmatprep.subr.mxu0 0.0
  %300 = vmatpush1.msra.mxu0 0.0
  %301 = vmatprep.subr.mxu0 0.0
  %302 = vmatpush1.msra.mxu0 0.0
  %303 = vmatprep.subr.mxu0 0.0
  %304 = vmatpush1.msra.mxu0 0.0
  %305 = vmatprep.subr.mxu0 0.0
  %306 = vmatpush1.msra.mxu0 0.0
  %307 = vmatprep.subr.mxu0 0.0
  %308 = vmatpush1.msra.mxu0 0.0
  %309 = vmatprep.subr.mxu0 0.0
  %310 = vmatpush1.msra.mxu0 0.0
  %311 = vmatprep.subr.mxu0 0.0
  %312 = vmatpush1.msra.mxu0 0.0
  %313 = vmatprep.mubr.f32.mxu0 0.0
  %314 = vmatmul.mubr.f32.gmra.mrb[0].mxu0 %v244
  %v315 = vpop.f32.mrb[0].mxu0
  %v316 = vadd.f32 %v240, %v315
  %v317 = vpop.f32.mrb[0].mxu0
  %318 = vmatprep.mubr.f32.mxu0 0.0
  %319 = vmatmul.mubr.f32.gmra.mrb[0].mxu0 %v247
  %v320 = vpop.f32.mrb[0].mxu0
  %v321 = vadd.f32 %v240, %v320
  %v322 = vpop.f32.mrb[0].mxu0
  %323 = vdwg.mxu0
  %vm324 = vcmask 64512
  %325 = vst.msk [vmem:[%s7] sm:$0xff] %vm324, %v316
  %326 = vst.msk [vmem:[%s7 + $0x8] sm:$0xff] %vm324, %v321
  // Predicated region
  $region30: #{_lambda_.1} parent=0 // pred_check
    _
  $region31: #{_lambda_.1} parent=0 // pred_check_branch
    %328 = sbr.rel (0) target = $region33
  $region32: #{_lambda_.1} parent=0 // pred_region
    _
  $region33: #{_lambda_.1} parent=0 // pred_fallthru
    _
  // Predicated region
  $region34: #{_lambda_.1} parent=0 // pred_check
    _
  $region35: #{_lambda_.1} parent=0 // pred_check_branch
    %330 = sbr.rel (0) target = $region37
  $region36: #{_lambda_.1} parent=0 // pred_region
    _
  $region37: #{_lambda_.1} parent=0 // pred_fallthru
    _

</llo_original>
